<compile_context>
chip_gen: v7x
topology: tpu7x:2x2x1
jax: 0.10.0
libtpu: 0.0.40
codegen_flags: <defaults>
</compile_context>

<pallas_src>
import functools

import jax
import jax.numpy as jnp
from jax.experimental import pallas as pl
from jax.experimental.pallas import tpu as pltpu


def _conv_mm_kernel(a_ref, b_ref, bias_ref, o_ref):
    # a_ref:    (M, K)        activations, M = N*Ho, K = KH*Wp*IC
    # b_ref:    (K, Wo*OC)    block-structured weights
    # bias_ref: (1, Wo*OC)    bias tiled along Wo
    # o_ref:    (M, Wo*OC)    lane-dense output slab
    acc = jnp.dot(a_ref[...], b_ref[...], preferred_element_type=jnp.float32)
    o_ref[...] = (acc + bias_ref[...]).astype(o_ref.dtype)


def conv2d_pallas(x_nchw, weight_oihw, bias=None, *, stride=1, padding=1,
                  dilation=1, groups=1, compute_dtype=None):
    assert stride == 1 and dilation == 1 and groups == 1, \
        "kernel implemented for the HardNet 3x3 conv configuration"

    n, ic, h, w = x_nchw.shape
    oc, ic_w, kh, kw = weight_oihw.shape
    assert ic == ic_w
    out_dtype = x_nchw.dtype

    if bias is None:
        bias = jnp.zeros((oc,), dtype=out_dtype)

    # ---- wrapper glue (layout transform, pad, shift-stack, weight prep) ----
    x_nhwc = jnp.transpose(x_nchw, (0, 2, 3, 1))                      # (N,H,W,IC)
    xpad = jnp.pad(x_nhwc, ((0, 0), (padding, padding),
                            (padding, padding), (0, 0)))              # (N,Hp,Wp,IC)
    hp, wp = h + 2 * padding, w + 2 * padding
    ho, wo = hp - kh + 1, wp - kw + 1

    # LHS: A[n*Ho + h, i*Wp*IC + p*IC + c] = xpad[n, h+i, p, c]
    rows = [xpad[:, i:i + ho, :, :].reshape(n, ho, wp * ic) for i in range(kh)]
    a2d = jnp.concatenate(rows, axis=-1).reshape(n * ho, kh * wp * ic)

    # RHS: B[i*Wp*IC + p*IC + c, w*OC + o] = sum_j [p == w + j] * W[o, c, i, j]
    w_hwio = jnp.transpose(weight_oihw, (2, 3, 1, 0))                 # (KH,KW,IC,OC)
    p_idx = jnp.arange(wp)
    q_idx = jnp.arange(wo)
    j_idx = jnp.arange(kw)
    sel = (p_idx[:, None, None] ==
           (q_idx[None, :, None] + j_idx[None, None, :])).astype(w_hwio.dtype)
    b5 = jnp.einsum('pqj,ijco->ipcqo', sel, w_hwio)                   # (KH,Wp,IC,Wo,OC)
    b2d = b5.reshape(kh * wp * ic, wo * oc)

    # Bias tiled along Wo so it broadcasts over the lane-dense output slab.
    bias_row = jnp.tile(bias.astype(jnp.float32), wo).reshape(1, wo * oc)

    if compute_dtype is not None:
        a2d = a2d.astype(compute_dtype)
        b2d = b2d.astype(compute_dtype)

    m_rows = n * ho
    k_depth = kh * wp * ic
    n_cols = wo * oc

    cost = pl.CostEstimate(
        flops=2 * m_rows * k_depth * n_cols,
        transcendentals=0,
        bytes_accessed=int(a2d.size * a2d.dtype.itemsize
                           + b2d.size * b2d.dtype.itemsize
                           + bias_row.size * bias_row.dtype.itemsize
                           + m_rows * n_cols * jnp.dtype(out_dtype).itemsize),
    )

    out2d = pl.pallas_call(
        _conv_mm_kernel,
        out_shape=jax.ShapeDtypeStruct((m_rows, n_cols), out_dtype),
        grid=(1,),
        in_specs=[
            pl.BlockSpec((m_rows, k_depth), lambda i: (0, 0)),
            pl.BlockSpec((k_depth, n_cols), lambda i: (0, 0)),
            pl.BlockSpec((1, n_cols), lambda i: (0, 0)),
        ],
        out_specs=pl.BlockSpec((m_rows, n_cols), lambda i: (0, 0)),
        compiler_params=pltpu.CompilerParams(
            dimension_semantics=("arbitrary",)),
        cost_estimate=cost,
    )(a2d, b2d, bias_row)

    # (N*Ho, Wo*OC) row-major == (N, Ho, Wo, OC) row-major -> free reshape,
    # then back to the PyTorch NCHW output layout.
    out_nhwc = out2d.reshape(n, ho, wo, oc)
    return jnp.transpose(out_nhwc, (0, 3, 1, 2))


if __name__ == "__main__":
    key = jax.random.PRNGKey(0)
    kx, kw_, kb = jax.random.split(key, 3)

    # Small shapes consistent with a HardNet conv: N=2, C_in=4, H=W=16,
    # C_out=8, kernel 3x3, stride 1, padding 1.  (Wo*OC = 128 -> lane-dense.)
    N, C_IN, H, W = 2, 4, 16, 16
    C_OUT, KH, KW = 8, 3, 3

    x = jax.random.normal(kx, (N, C_IN, H, W), dtype=jnp.float32)
    weight = jax.random.normal(kw_, (C_OUT, C_IN, KH, KW), dtype=jnp.float32) * 0.1
    bias = jax.random.normal(kb, (C_OUT,), dtype=jnp.float32) * 0.1

    conv = jax.jit(functools.partial(conv2d_pallas, stride=1, padding=1))
    out = conv(x, weight, bias)
    out = jax.block_until_ready(out)

    # Reference check against XLA conv (same aten.convolution.default semantics).
    ref = jax.lax.conv_general_dilated(
        x, weight, window_strides=(1, 1), padding=((1, 1), (1, 1)),
        dimension_numbers=("NCHW", "OIHW", "NCHW"),
    ) + bias.reshape(1, C_OUT, 1, 1)
    assert out.shape == ref.shape == (N, C_OUT, H, W)
    assert jnp.allclose(out, ref, atol=1e-4, rtol=1e-4)

    print("KERNEL_OK")
</pallas_src>

<mosaic_0001>
module attributes {stable_mosaic.version = 11 : i64} {
  func.func @_conv_mm_kernel(%arg0: i32, %arg1: memref<32x216xf32, #tpu.memory_space<vmem>>, %arg2: memref<216x128xf32, #tpu.memory_space<vmem>>, %arg3: memref<1x128xf32, #tpu.memory_space<vmem>>, %arg4: memref<32x128xf32, #tpu.memory_space<vmem>>) attributes {dimension_semantics = [#tpu.dimension_semantics<arbitrary>], iteration_bounds = array<i64: 1>, scalar_prefetch = 0 : i64, scratch_operands = 0 : i64, tpu.core_type = #tpu.core_type<tc>, window_params = [{pipeline_mode = #tpu.pipeline_mode<synchronous>, transform_indices = @transform_0, window_bounds = array<i64: 32, 216>}, {pipeline_mode = #tpu.pipeline_mode<synchronous>, transform_indices = @transform_1, window_bounds = array<i64: 216, 128>}, {pipeline_mode = #tpu.pipeline_mode<synchronous>, transform_indices = @transform_2, window_bounds = array<i64: 1, 128>}, {pipeline_mode = #tpu.pipeline_mode<synchronous>, transform_indices = @transform_3, window_bounds = array<i64: 32, 128>}]} {
    %c0 = arith.constant 0 : index
    %c0_0 = arith.constant 0 : index
    %0 = vector.load %arg1[%c0, %c0_0] : memref<32x216xf32, #tpu.memory_space<vmem>>, vector<32x216xf32>
    %c0_1 = arith.constant 0 : index
    %c0_2 = arith.constant 0 : index
    %1 = vector.load %arg2[%c0_1, %c0_2] : memref<216x128xf32, #tpu.memory_space<vmem>>, vector<216x128xf32>
    %cst = arith.constant dense<0.000000e+00> : vector<32x128xf32>
    %2 = tpu.matmul %0, %1, %cst {dimension_numbers = #tpu.dot_dimension_numbers<[1], [0], [0], [1], [0, 0, 1, 1], [], []>} : vector<32x216xf32>, vector<216x128xf32>, vector<32x128xf32> -> vector<32x128xf32>
    %c0_3 = arith.constant 0 : index
    %c0_4 = arith.constant 0 : index
    %3 = vector.load %arg3[%c0_3, %c0_4] : memref<1x128xf32, #tpu.memory_space<vmem>>, vector<1x128xf32>
    %4 = vector.broadcast %3 : vector<1x128xf32> to vector<32x128xf32>
    %5 = arith.addf %2, %4 : vector<32x128xf32>
    %c0_5 = arith.constant 0 : index
    %c0_6 = arith.constant 0 : index
    %6 = vector.load %arg4[%c0_5, %c0_6] : memref<32x128xf32, #tpu.memory_space<vmem>>, vector<32x128xf32>
    tpu.vector_store %arg4[%c0_5, %c0_6], %5 {strides = array<i32>} : memref<32x128xf32, #tpu.memory_space<vmem>>, vector<32x128xf32>,
    return
  }
  func.func @transform_0(%arg0: i32) -> (i32, i32) {
    %c0_i32 = arith.constant 0 : i32
    %c0_i32_0 = arith.constant 0 : i32
    %c0_i32_1 = arith.constant 0 : i32
    return %c0_i32, %c0_i32_0 : i32, i32
  }
  func.func @transform_1(%arg0: i32) -> (i32, i32) {
    %c0_i32 = arith.constant 0 : i32
    %c0_i32_0 = arith.constant 0 : i32
    %c0_i32_1 = arith.constant 0 : i32
    return %c0_i32, %c0_i32_0 : i32, i32
  }
  func.func @transform_2(%arg0: i32) -> (i32, i32) {
    %c0_i32 = arith.constant 0 : i32
    %c0_i32_0 = arith.constant 0 : i32
    %c0_i32_1 = arith.constant 0 : i32
    return %c0_i32, %c0_i32_0 : i32, i32
  }
  func.func @transform_3(%arg0: i32) -> (i32, i32) {
    %c0_i32 = arith.constant 0 : i32
    %c0_i32_0 = arith.constant 0 : i32
    %c0_i32_1 = arith.constant 0 : i32
    return %c0_i32, %c0_i32_0 : i32, i32
  }
}

</mosaic_0001>

<llo_original>
// kernel: tile.8
$region0: #{tile.8}
  #allocation0 [shape = 's32[1]{0}', space=sflag, size = 0x4, scoped, tag = 'scoped memory for tile.8']
  %s0 = inlined_call_operand.vmem [shape: f32[8], index: 0, kind: input, shape index: {}]
  %s1 = inlined_call_operand.vmem [shape: f32[16,8], index: 1, kind: output, shape index: {}]
  // Predicated region
  $region2: #{tile.8} parent=0 // pred_check
    _
  $region3: #{tile.8} parent=0 // pred_check_branch
    %3 = sbr.rel (0) target = $region5
  $region4: #{tile.8} parent=0 // pred_region
    _
  $region5: #{tile.8} parent=0 // pred_fallthru
    _
  %v4 = vld [vmem:[%s0] ss:$0 sm:$0xff]
  %5 = vst [vmem:[%s1] sm:$0xff] %v4
  %s6 = scalar_lea.vmem %s1, 8
  %7 = vst [vmem:[%s6] sm:$0xff] %v4

// kernel: tile.9
$region0: #{tile.9}
  %s0 = inlined_call_operand.vmem [shape: f32[16,8], index: 0, kind: input, shape index: {}]
  %s1 = inlined_call_operand.vmem [shape: f32[1,128], index: 1, kind: output, shape index: {}]
  $region1: #{tile.9} parent=0
    #allocation0 [shape = 'u8[4096]{0}', space=vmem, size = 0x1000, scoped, tag = 'scoped mem for output reshape']
    %v2 = vld [vmem:[%s0] sm:$0x1]
    %vm3 = vcmask 64512
    %4 = vst.msk [vmem:[#allocation0] sm:$0x1] %vm3, %v2
    %s5 = scalar_lea.vmem %s0, 15
    %v6 = vld [vmem:[%s5] sm:$0x1]
    %7 = vrot.lane.b32.xlu0 %v6, 120
    %v8 = vpop.permute.xlu0 %7
    %vm9 = vcmask 1048512
    %10 = vst.msk [vmem:[#allocation0] sm:$0x1] %vm9, %v8
    %s11 = scalar_lea.vmem %s0, 14
    %v12 = vld [vmem:[%s11] sm:$0x1]
    %13 = vrot.lane.b32.xlu0 %v12, 112
    %v14 = vpop.permute.xlu0 %13
    %vm15 = vcmask 982912
    %16 = vst.msk [vmem:[#allocation0] sm:$0x1] %vm15, %v14
    %s17 = scalar_lea.vmem %s0, 13
    %v18 = vld [vmem:[%s17] sm:$0x1]
    %19 = vrot.lane.b32.xlu0 %v18, 104
    %v20 = vpop.permute.xlu0 %19
    %vm21 = vcmask 917312
    %22 = vst.msk [vmem:[#allocation0] sm:$0x1] %vm21, %v20
    %s23 = scalar_lea.vmem %s0, 12
    %v24 = vld [vmem:[%s23] sm:$0x1]
    %25 = vrot.lane.b32.xlu0 %v24, 96
    %v26 = vpop.permute.xlu0 %25
    %vm27 = vcmask 851712
    %28 = vst.msk [vmem:[#allocation0] sm:$0x1] %vm27, %v26
    %s29 = scalar_lea.vmem %s0, 11
    %v30 = vld [vmem:[%s29] sm:$0x1]
    %31 = vrot.lane.b32.xlu0 %v30, 88
    %v32 = vpop.permute.xlu0 %31
    %vm33 = vcmask 786112
    %34 = vst.msk [vmem:[#allocation0] sm:$0x1] %vm33, %v32
    %s35 = scalar_lea.vmem %s0, 10
    %v36 = vld [vmem:[%s35] sm:$0x1]
    %37 = vrot.lane.b32.xlu0 %v36, 80
    %v38 = vpop.permute.xlu0 %37
    %vm39 = vcmask 720512
    %40 = vst.msk [vmem:[#allocation0] sm:$0x1] %vm39, %v38
    %s41 = scalar_lea.vmem %s0, 9
    %v42 = vld [vmem:[%s41] sm:$0x1]
    %43 = vrot.lane.b32.xlu0 %v42, 72
    %v44 = vpop.permute.xlu0 %43
    %vm45 = vcmask 654912
    %46 = vst.msk [vmem:[#allocation0] sm:$0x1] %vm45, %v44
    %s47 = scalar_lea.vmem %s0, 8
    %v48 = vld [vmem:[%s47] sm:$0x1]
    %49 = vrot.lane.b32.xlu0 %v48, 64
    %v50 = vpop.permute.xlu0 %49
    %vm51 = vcmask 589312
    %52 = vst.msk [vmem:[#allocation0] sm:$0x1] %vm51, %v50
    %s53 = scalar_lea.vmem %s0, 7
    %v54 = vld [vmem:[%s53] sm:$0x1]
    %55 = vrot.lane.b32.xlu0 %v54, 56
    %v56 = vpop.permute.xlu0 %55
    %vm57 = vcmask 523712
    %58 = vst.msk [vmem:[#allocation0] sm:$0x1] %vm57, %v56
    %s59 = scalar_lea.vmem %s0, 6
    %v60 = vld [vmem:[%s59] sm:$0x1]
    %61 = vrot.lane.b32.xlu0 %v60, 48
    %v62 = vpop.permute.xlu0 %61
    %vm63 = vcmask 458112
    %64 = vst.msk [vmem:[#allocation0] sm:$0x1] %vm63, %v62
    %s65 = scalar_lea.vmem %s0, 5
    %v66 = vld [vmem:[%s65] sm:$0x1]
    %67 = vrot.lane.b32.xlu0 %v66, 40
    %v68 = vpop.permute.xlu0 %67
    %vm69 = vcmask 392512
    %70 = vst.msk [vmem:[#allocation0] sm:$0x1] %vm69, %v68
    %s71 = scalar_lea.vmem %s0, 4
    %v72 = vld [vmem:[%s71] sm:$0x1]
    %73 = vrot.lane.b32.xlu0 %v72, 32
    %v74 = vpop.permute.xlu0 %73
    %vm75 = vcmask 326912
    %76 = vst.msk [vmem:[#allocation0] sm:$0x1] %vm75, %v74
    %s77 = scalar_lea.vmem %s0, 3
    %v78 = vld [vmem:[%s77] sm:$0x1]
    %79 = vrot.lane.b32.xlu0 %v78, 24
    %v80 = vpop.permute.xlu0 %79
    %vm81 = vcmask 261312
    %82 = vst.msk [vmem:[#allocation0] sm:$0x1] %vm81, %v80
    %s83 = scalar_lea.vmem %s0, 2
    %v84 = vld [vmem:[%s83] sm:$0x1]
    %85 = vrot.lane.b32.xlu0 %v84, 16
    %v86 = vpop.permute.xlu0 %85
    %vm87 = vcmask 195712
    %88 = vst.msk [vmem:[#allocation0] sm:$0x1] %vm87, %v86
    %s89 = scalar_lea.vmem %s0, 1
    %v90 = vld [vmem:[%s89] sm:$0x1]
    %91 = vrot.lane.b32.xlu0 %v90, 8
    %v92 = vpop.permute.xlu0 %91
    %vm93 = vcmask 130112
    %94 = vst.msk [vmem:[#allocation0] sm:$0x1] %vm93, %v92
    %s96 = sshllo.u32 0, 1
    %v98 = vld [vmem:[#allocation0] sm:%s96]
    %s99 = sshllo.u32 0, 1
    %100 = vst [vmem:[%s1] sm:%s99] %v98

// kernel: conv2d_pallas.1
$region0: #{conv2d_pallas.1}
  #allocation0 [shape = 'u32[]', space=smem, size = 0x4, offset = 0x4, fixed_abs, tag = 'smem constant byte address 0x4 - core index']
  #allocation1 [shape = 'u32[144,128]{1,0:T(1,128)}', space=vmem, size = 0x12000, scoped, tag = 'internal scratch']
  %s0 = inlined_call_operand.vmem [shape: f32[32,216], index: 0, kind: input, shape index: {}]
  %s1 = inlined_call_operand.vmem [shape: f32[216,128], index: 1, kind: input, shape index: {}]
  %s2 = inlined_call_operand.vmem [shape: f32[1,128], index: 2, kind: input, shape index: {}]
  %s3 = inlined_call_operand.vmem [shape: f32[32,128], index: 3, kind: output, shape index: {}]
  %s4 = sld [smem:[#allocation0]]
  $region22: #{conv2d_pallas.1} parent=0
    _
  %s6 = ssub.s32 1, %s4
  %s7 = scalar_select 0, %s6, %s4
  // Predicated region
  $region2: #{conv2d_pallas.1} parent=0 // pred_check
    _
  $region3: #{conv2d_pallas.1} parent=0 // pred_check_branch
    %9 = sbr.rel (0) target = $region5
  $region4: #{conv2d_pallas.1} parent=0 // pred_region
    _
  $region5: #{conv2d_pallas.1} parent=0 // pred_fallthru
    _
  // Predicated region
  $region6: #{conv2d_pallas.1} parent=0 // pred_check
    _
  $region7: #{conv2d_pallas.1} parent=0 // pred_check_branch
    %11 = sbr.rel (0) target = $region9
  $region8: #{conv2d_pallas.1} parent=0 // pred_region
    _
  $region9: #{conv2d_pallas.1} parent=0 // pred_fallthru
    _
  // Predicated region
  $region10: #{conv2d_pallas.1} parent=0 // pred_check
    _
  $region11: #{conv2d_pallas.1} parent=0 // pred_check_branch
    %13 = sbr.rel (0) target = $region13
  $region12: #{conv2d_pallas.1} parent=0 // pred_region
    _
  $region13: #{conv2d_pallas.1} parent=0 // pred_fallthru
    _
  %v14 = vld [vmem:[%s0] sm:$0xff]
  %v15 = vld [vmem:[%s0 + $0x8] sm:$0xff]
  %v16 = vld [vmem:[%s0 + $0x10] sm:$0xff]
  %v17 = vld [vmem:[%s0 + $0x18] sm:$0xff]
  %v18 = vld [vmem:[%s0 + $0x20] sm:$0xff]
  %v19 = vld [vmem:[%s0 + $0x28] sm:$0xff]
  %v20 = vld [vmem:[%s0 + $0x30] sm:$0xff]
  %v21 = vld [vmem:[%s0 + $0x38] sm:$0xff]
  %v22 = vld [vmem:[%s1] sm:$0xff]
  %v23 = vld [vmem:[%s1 + $0x8] sm:$0xff]
  %v24 = vld [vmem:[%s1 + $0x10] sm:$0xff]
  %v25 = vld [vmem:[%s1 + $0x18] sm:$0xff]
  %v26 = vld [vmem:[%s1 + $0x20] sm:$0xff]
  %v27 = vld [vmem:[%s1 + $0x28] sm:$0xff]
  %v28 = vld [vmem:[%s1 + $0x30] sm:$0xff]
  %v29 = vld [vmem:[%s1 + $0x38] sm:$0xff]
  %v30 = vld [vmem:[%s1 + $0x40] sm:$0xff]
  %v31 = vld [vmem:[%s1 + $0x48] sm:$0xff]
  %v32 = vld [vmem:[%s1 + $0x50] sm:$0xff]
  %v33 = vld [vmem:[%s1 + $0x58] sm:$0xff]
  %v34 = vld [vmem:[%s1 + $0x60] sm:$0xff]
  %v35 = vld [vmem:[%s1 + $0x68] sm:$0xff]
  %v36 = vld [vmem:[%s1 + $0x70] sm:$0xff]
  %v37 = vld [vmem:[%s1 + $0x78] sm:$0xff]
  %v38 = vld [vmem:[%s1 + $0x80] sm:$0xff]
  %v39 = vld [vmem:[%s1 + $0x88] sm:$0xff]
  %v40 = vld [vmem:[%s1 + $0x90] sm:$0xff]
  %v41 = vld [vmem:[%s1 + $0x98] sm:$0xff]
  %v42 = vld [vmem:[%s1 + $0xa0] sm:$0xff]
  %v43 = vld [vmem:[%s1 + $0xa8] sm:$0xff]
  %v44 = vld [vmem:[%s1 + $0xb0] sm:$0xff]
  %v45 = vld [vmem:[%s1 + $0xb8] sm:$0xff]
  %v46 = vld [vmem:[%s1 + $0xc0] sm:$0xff]
  %v47 = vld [vmem:[%s1 + $0xc8] sm:$0xff]
  %v48 = vld [vmem:[%s1 + $0xd0] sm:$0xff]
  %v49 = vld [vmem:[%s2] sm:$0x1]
  %v51 = vlaneseq
  %v52 = vshrl.u32 %v51, 7
  %v53 = vsub.s32 0, %v52
  %v54 = vrot.slane %v49, %v53
  %vm56 = vcmask 719872
  %v58 = vsel %vm56, %v15, 0
  %v61 = vsel %vm56, %v17, 0
  %v64 = vsel %vm56, %v19, 0
  %v67 = vsel %vm56, %v21, 0
  %69 = vmatprep.subr.mxu0 0.0
  %70 = vmatpush1.msra.mxu0 %v22
  %71 = vmatprep.subr.mxu0 0.0
  %72 = vmatpush1.msra.mxu0 %v23
  %73 = vmatprep.subr.mxu0 0.0
  %74 = vmatpush1.msra.mxu0 %v24
  %75 = vmatprep.subr.mxu0 0.0
  %76 = vmatpush1.msra.mxu0 %v25
  %77 = vmatprep.subr.mxu0 0.0
  %78 = vmatpush1.msra.mxu0 %v26
  %79 = vmatprep.subr.mxu0 0.0
  %80 = vmatpush1.msra.mxu0 %v27
  %81 = vmatprep.subr.mxu0 0.0
  %82 = vmatpush1.msra.mxu0 %v28
  %83 = vmatprep.subr.mxu0 0.0
  %84 = vmatpush1.msra.mxu0 %v29
  %85 = vmatprep.subr.mxu0 0.0
  %86 = vmatpush1.msra.mxu0 %v30
  %87 = vmatprep.subr.mxu0 0.0
  %88 = vmatpush1.msra.mxu0 %v31
  %89 = vmatprep.subr.mxu0 0.0
  %90 = vmatpush1.msra.mxu0 %v32
  %91 = vmatprep.subr.mxu0 0.0
  %92 = vmatpush1.msra.mxu0 %v33
  %93 = vmatprep.subr.mxu0 0.0
  %94 = vmatpush1.msra.mxu0 %v34
  %95 = vmatprep.subr.mxu0 0.0
  %96 = vmatpush1.msra.mxu0 %v35
  %97 = vmatprep.subr.mxu0 0.0
  %98 = vmatpush1.msra.mxu0 %v36
  %99 = vmatprep.subr.mxu0 0.0
  %100 = vmatpush1.msra.mxu0 %v37
  %101 = vmatprep.subr.mxu0 0.0
  %102 = vmatpush1.msra.mxu0 %v38
  %103 = vmatprep.subr.mxu0 0.0
  %104 = vmatpush1.msra.mxu0 %v39
  %105 = vmatprep.subr.mxu0 0.0
  %106 = vmatpush1.msra.mxu0 %v40
  %107 = vmatprep.subr.mxu0 0.0
  %108 = vmatpush1.msra.mxu0 %v41
  %109 = vmatprep.subr.mxu0 0.0
  %110 = vmatpush1.msra.mxu0 %v42
  %111 = vmatprep.subr.mxu0 0.0
  %112 = vmatpush1.msra.mxu0 %v43
  %113 = vmatprep.subr.mxu0 0.0
  %114 = vmatpush1.msra.mxu0 %v44
  %115 = vmatprep.subr.mxu0 0.0
  %116 = vmatpush1.msra.mxu0 %v45
  %117 = vmatprep.subr.mxu0 0.0
  %118 = vmatpush1.msra.mxu0 %v46
  %119 = vmatprep.subr.mxu0 0.0
  %120 = vmatpush1.msra.mxu0 %v47
  %121 = vmatprep.subr.mxu0 0.0
  %122 = vmatpush1.msra.mxu0 %v48
  %123 = vmatprep.subr.mxu0 0.0
  %124 = vmatpush1.msra.mxu0 0.0
  %125 = vmatprep.subr.mxu0 0.0
  %126 = vmatpush1.msra.mxu0 0.0
  %127 = vmatprep.subr.mxu0 0.0
  %128 = vmatpush1.msra.mxu0 0.0
  %129 = vmatprep.subr.mxu0 0.0
  %130 = vmatpush1.msra.mxu0 0.0
  %131 = vmatprep.subr.mxu0 0.0
  %132 = vmatpush1.msra.mxu0 0.0
  %133 = vmatprep.mubr.f32.mxu0 %v58
  %134 = vmatmul.mubr.f32.gmra.mrb[0].mxu0 %v14
  %v135 = vpop.f32.mrb[0].mxu0
  %v136 = vadd.f32 %v54, %v135
  %v137 = vpop.f32.mrb[0].mxu0
  %138 = vmatprep.mubr.f32.mxu0 %v61
  %139 = vmatmul.mubr.f32.gmra.mrb[0].mxu0 %v16
  %v140 = vpop.f32.mrb[0].mxu0
  %v141 = vadd.f32 %v54, %v140
  %v142 = vpop.f32.mrb[0].mxu0
  %143 = vmatprep.mubr.f32.mxu0 %v64
  %144 = vmatmul.mubr.f32.gmra.mrb[0].mxu0 %v18
  %v145 = vpop.f32.mrb[0].mxu0
  %v146 = vadd.f32 %v54, %v145
  %v147 = vpop.f32.mrb[0].mxu0
  %148 = vmatprep.mubr.f32.mxu0 %v67
  %149 = vmatmul.mubr.f32.gmra.mrb[0].mxu0 %v20
  %v150 = vpop.f32.mrb[0].mxu0
  %v151 = vadd.f32 %v54, %v150
  %v152 = vpop.f32.mrb[0].mxu0
  %153 = vdwg.mxu0
  %154 = vst [vmem:[%s3] sm:$0xff] %v136
  %155 = vst [vmem:[%s3 + $0x8] sm:$0xff] %v141
  %156 = vst [vmem:[%s3 + $0x10] sm:$0xff] %v146
  %157 = vst [vmem:[%s3 + $0x18] sm:$0xff] %v151
  // Predicated region
  $region14: #{conv2d_pallas.1} parent=0 // pred_check
    _
  $region15: #{conv2d_pallas.1} parent=0 // pred_check_branch
    %159 = sbr.rel (0) target = $region17
  $region16: #{conv2d_pallas.1} parent=0 // pred_region
    _
  $region17: #{conv2d_pallas.1} parent=0 // pred_fallthru
    _
  // Predicated region
  $region18: #{conv2d_pallas.1} parent=0 // pred_check
    _
  $region19: #{conv2d_pallas.1} parent=0 // pred_check_branch
    %161 = sbr.rel (0) target = $region21
  $region20: #{conv2d_pallas.1} parent=0 // pred_region
    _
  $region21: #{conv2d_pallas.1} parent=0 // pred_fallthru
    _

</llo_original>
